<compile_context>
chip_gen: v6e
topology: v6e:2x2x1
jax: 0.10.0
libtpu: 0.0.40
codegen_flags: <defaults>
</compile_context>

<pallas_src>
import jax
import jax.numpy as jnp
from jax.experimental import pallas as pl
from jax.experimental.pallas import tpu as pltpu


def _rnn_kernel(x_ref, ut_ref, wt_ref, o_ref, h_ref):
    # x_ref : (B, Tc, In)  input chunk (batch-major)
    # ut_ref: (In, H)      U^T   (x @ ut == x @ U.T)
    # wt_ref: (H, H)       W^T   (h @ wt == h @ W.T)
    # o_ref : (B, Tc, H)   output chunk
    # h_ref : (B, H)       hidden state carried across time chunks (VMEM scratch)
    B, Tc, In = x_ref.shape
    H = wt_ref.shape[0]

    chunk = pl.program_id(0)

    @pl.when(chunk == 0)
    def _():
        h_ref[...] = jnp.zeros_like(h_ref)

    # Non-recurrent part, hoisted out of the time loop: one MXU matmul per chunk.
    x_chunk = x_ref[...]                                   # (B, Tc, In)
    xu = jnp.dot(
        x_chunk.reshape(B * Tc, In), ut_ref[...],
        preferred_element_type=jnp.float32,
    ).reshape(B, Tc, H)                                    # (B, Tc, H)

    w_t = wt_ref[...]                                      # (H, H)

    # Serial recurrence over the chunk. Tc is static, so this is fully unrolled
    # straight-line code; h lives in vregs, not VMEM, between steps.
    h = h_ref[...]                                         # (B, H)
    for i in range(Tc):
        pre = xu[:, i, :] + jnp.dot(h, w_t, preferred_element_type=jnp.float32)
        h = jnp.maximum(pre, 0.0)
        o_ref[:, i, :] = h.astype(o_ref.dtype)

    h_ref[...] = h                                         # carry to next chunk


def _pick_time_chunk(T: int, max_chunk: int = 32) -> int:
    """Largest legal time chunk: Tc == T (full dim) is always legal; otherwise
    Tc must divide T and be a multiple of 8 (2nd-minor block-dim constraint)."""
    if T <= max_chunk:
        return T
    for c in range(max_chunk, 7, -1):
        if c % 8 == 0 and T % c == 0:
            return c
    return T  # fallback: whole sequence as one chunk


def rnn_hidden_forward(x, U, W, *, max_chunk=32):
    """x: (B, T, In) f32; U: (H, In); W: (H, H)  ->  (B, T, H) f32."""
    B, T, In = x.shape
    H = U.shape[0]
    U_T = U.T  # (In, H), transposed once outside the loop
    W_T = W.T  # (H, H)

    Tc = _pick_time_chunk(T, max_chunk)
    grid = (T // Tc,)

    return pl.pallas_call(
        _rnn_kernel,
        out_shape=jax.ShapeDtypeStruct((B, T, H), jnp.float32),
        grid_spec=pltpu.PrefetchScalarGridSpec(
            num_scalar_prefetch=0,
            grid=grid,
            in_specs=[
                pl.BlockSpec((B, Tc, In), lambda c: (0, c, 0)),   # x chunk
                pl.BlockSpec((In, H), lambda c: (0, 0)),          # U^T (resident)
                pl.BlockSpec((H, H), lambda c: (0, 0)),           # W^T (resident)
            ],
            out_specs=pl.BlockSpec((B, Tc, H), lambda c: (0, c, 0)),
            scratch_shapes=[pltpu.VMEM((B, H), jnp.float32)],
        ),
        compiler_params=pltpu.CompilerParams(
            dimension_semantics=("arbitrary",),  # time recurrence is sequential
        ),
    )(x, U_T, W_T)


def rnn_hidden_ref(x, U, W):
    """Pure-JAX reference matching the PyTorch loop."""
    B, T, In = x.shape
    H = U.shape[0]
    h = jnp.zeros((B, H), jnp.float32)
    outs = []
    for t in range(T):
        s1 = x[:, t, :] @ U.T
        s2 = h @ W.T
        h = jnp.maximum(s1 + s2, 0.0)
        outs.append(h)
    return jnp.stack(outs, axis=1)


if __name__ == "__main__":
    batch, seq, in_features, out_features = 2, 8, 16, 32

    key = jax.random.PRNGKey(0)
    kx, ku, kw = jax.random.split(key, 3)
    x = jax.random.normal(kx, (batch, seq, in_features), jnp.float32)
    # torch.nn.init.normal_ -> standard normal
    U = jax.random.normal(ku, (out_features, in_features), jnp.float32)
    W = jax.random.normal(kw, (out_features, out_features), jnp.float32)

    out = rnn_hidden_forward(x, U, W)
    out = jax.block_until_ready(out)

    ref = rnn_hidden_ref(x, U, W)
    assert out.shape == (batch, seq, out_features)
    assert jnp.allclose(out, ref, atol=1e-4, rtol=1e-4)

    print("KERNEL_OK")
</pallas_src>

<mosaic_0001>
module attributes {stable_mosaic.version = 11 : i64} {
  func.func @_rnn_kernel(%arg0: i32, %arg1: memref<2x8x16xf32, #tpu.memory_space<vmem>>, %arg2: memref<16x32xf32, #tpu.memory_space<vmem>>, %arg3: memref<32x32xf32, #tpu.memory_space<vmem>>, %arg4: memref<2x8x32xf32, #tpu.memory_space<vmem>>, %arg5: memref<2x32xf32, #tpu.memory_space<vmem>>) attributes {dimension_semantics = [#tpu.dimension_semantics<arbitrary>], iteration_bounds = array<i64: 1>, scalar_prefetch = 0 : i64, scratch_operands = 1 : i64, tpu.core_type = #tpu.core_type<tc>, window_params = [{transform_indices = @transform_0, window_bounds = array<i64: 2, 8, 16>}, {pipeline_mode = #tpu.pipeline_mode<synchronous>, transform_indices = @transform_1, window_bounds = array<i64: 16, 32>}, {pipeline_mode = #tpu.pipeline_mode<synchronous>, transform_indices = @transform_2, window_bounds = array<i64: 32, 32>}, {transform_indices = @transform_3, window_bounds = array<i64: 2, 8, 32>}]} {
    %c0_i32 = arith.constant 0 : i32
    %0 = arith.cmpi eq, %arg0, %c0_i32 : i32
    %1 = arith.extui %0 : i1 to i32
    %c0_i32_0 = arith.constant 0 : i32
    %2 = arith.cmpi ne, %1, %c0_i32_0 : i32
    scf.if %2 {
      %cst_44 = arith.constant 0.000000e+00 : f32
      %83 = vector.broadcast %cst_44 : f32 to vector<2x32xf32>
      %c0_45 = arith.constant 0 : index
      %c0_46 = arith.constant 0 : index
      %84 = vector.load %arg5[%c0_45, %c0_46] : memref<2x32xf32, #tpu.memory_space<vmem>>, vector<2x32xf32>
      tpu.vector_store %arg5[%c0_45, %c0_46], %83 {strides = array<i32>} : memref<2x32xf32, #tpu.memory_space<vmem>>, vector<2x32xf32>,
    } else {
    }
    %c0 = arith.constant 0 : index
    %c0_1 = arith.constant 0 : index
    %c0_2 = arith.constant 0 : index
    %3 = vector.load %arg1[%c0, %c0_1, %c0_2] : memref<2x8x16xf32, #tpu.memory_space<vmem>>, vector<2x8x16xf32>
    %4 = vector.shape_cast %3 : vector<2x8x16xf32> to vector<16x16xf32>
    %c0_3 = arith.constant 0 : index
    %c0_4 = arith.constant 0 : index
    %5 = vector.load %arg2[%c0_3, %c0_4] : memref<16x32xf32, #tpu.memory_space<vmem>>, vector<16x32xf32>
    %cst = arith.constant dense<0.000000e+00> : vector<16x32xf32>
    %6 = tpu.matmul %4, %5, %cst {dimension_numbers = #tpu.dot_dimension_numbers<[1], [0], [0], [1], [0, 0, 1, 1], [], []>} : vector<16x16xf32>, vector<16x32xf32>, vector<16x32xf32> -> vector<16x32xf32>
    %7 = vector.shape_cast %6 : vector<16x32xf32> to vector<2x8x32xf32>
    %c0_5 = arith.constant 0 : index
    %c0_6 = arith.constant 0 : index
    %8 = vector.load %arg3[%c0_5, %c0_6] : memref<32x32xf32, #tpu.memory_space<vmem>>, vector<32x32xf32>
    %c0_7 = arith.constant 0 : index
    %c0_8 = arith.constant 0 : index
    %9 = vector.load %arg5[%c0_7, %c0_8] : memref<2x32xf32, #tpu.memory_space<vmem>>, vector<2x32xf32>
    %10 = vector.extract_strided_slice %7 {offsets = [0, 0, 0], sizes = [2, 1, 32], strides = [1, 1, 1]} : vector<2x8x32xf32> to vector<2x1x32xf32>
    %11 = vector.shape_cast %10 : vector<2x1x32xf32> to vector<2x32xf32>
    %cst_9 = arith.constant dense<0.000000e+00> : vector<2x32xf32>
    %12 = tpu.matmul %9, %8, %cst_9 {dimension_numbers = #tpu.dot_dimension_numbers<[1], [0], [0], [1], [0, 0, 1, 1], [], []>} : vector<2x32xf32>, vector<32x32xf32>, vector<2x32xf32> -> vector<2x32xf32>
    %13 = arith.addf %11, %12 : vector<2x32xf32>
    %cst_10 = arith.constant 0.000000e+00 : f32
    %14 = vector.broadcast %cst_10 : f32 to vector<2x32xf32>
    %15 = arith.maximumf %13, %14 : vector<2x32xf32>
    %c0_11 = arith.constant 0 : index
    %c0_12 = arith.constant 0 : index
    %c0_13 = arith.constant 0 : index
    %16 = vector.load %arg4[%c0_11, %c0_12, %c0_13] : memref<2x8x32xf32, #tpu.memory_space<vmem>>, vector<2x1x32xf32>
    %17 = vector.shape_cast %16 : vector<2x1x32xf32> to vector<2x32xf32>
    %18 = vector.shape_cast %15 : vector<2x32xf32> to vector<2x1x32xf32>
    tpu.vector_store %arg4[%c0_11, %c0_12, %c0_13], %18 {strides = array<i32>} : memref<2x8x32xf32, #tpu.memory_space<vmem>>, vector<2x1x32xf32>,
    %19 = vector.extract_strided_slice %7 {offsets = [0, 1, 0], sizes = [2, 1, 32], strides = [1, 1, 1]} : vector<2x8x32xf32> to vector<2x1x32xf32>
    %20 = vector.shape_cast %19 : vector<2x1x32xf32> to vector<2x32xf32>
    %cst_14 = arith.constant dense<0.000000e+00> : vector<2x32xf32>
    %21 = tpu.matmul %15, %8, %cst_14 {dimension_numbers = #tpu.dot_dimension_numbers<[1], [0], [0], [1], [0, 0, 1, 1], [], []>} : vector<2x32xf32>, vector<32x32xf32>, vector<2x32xf32> -> vector<2x32xf32>
    %22 = arith.addf %20, %21 : vector<2x32xf32>
    %cst_15 = arith.constant 0.000000e+00 : f32
    %23 = vector.broadcast %cst_15 : f32 to vector<2x32xf32>
    %24 = arith.maximumf %22, %23 : vector<2x32xf32>
    %c0_16 = arith.constant 0 : index
    %c1 = arith.constant 1 : index
    %c0_17 = arith.constant 0 : index
    %25 = vector.load %arg4[%c0_16, %c1, %c0_17] : memref<2x8x32xf32, #tpu.memory_space<vmem>>, vector<2x1x32xf32>
    %26 = vector.shape_cast %25 : vector<2x1x32xf32> to vector<2x32xf32>
    %27 = vector.shape_cast %24 : vector<2x32xf32> to vector<2x1x32xf32>
    tpu.vector_store %arg4[%c0_16, %c1, %c0_17], %27 {strides = array<i32>} : memref<2x8x32xf32, #tpu.memory_space<vmem>>, vector<2x1x32xf32>,
    %28 = vector.extract_strided_slice %7 {offsets = [0, 2, 0], sizes = [2, 1, 32], strides = [1, 1, 1]} : vector<2x8x32xf32> to vector<2x1x32xf32>
    %29 = vector.shape_cast %28 : vector<2x1x32xf32> to vector<2x32xf32>
    %cst_18 = arith.constant dense<0.000000e+00> : vector<2x32xf32>
    %30 = tpu.matmul %24, %8, %cst_18 {dimension_numbers = #tpu.dot_dimension_numbers<[1], [0], [0], [1], [0, 0, 1, 1], [], []>} : vector<2x32xf32>, vector<32x32xf32>, vector<2x32xf32> -> vector<2x32xf32>
    %31 = arith.addf %29, %30 : vector<2x32xf32>
    %cst_19 = arith.constant 0.000000e+00 : f32
    %32 = vector.broadcast %cst_19 : f32 to vector<2x32xf32>
    %33 = arith.maximumf %31, %32 : vector<2x32xf32>
    %c0_20 = arith.constant 0 : index
    %c2 = arith.constant 2 : index
    %c0_21 = arith.constant 0 : index
    %34 = vector.load %arg4[%c0_20, %c2, %c0_21] : memref<2x8x32xf32, #tpu.memory_space<vmem>>, vector<2x1x32xf32>
    %35 = vector.shape_cast %34 : vector<2x1x32xf32> to vector<2x32xf32>
    %36 = vector.shape_cast %33 : vector<2x32xf32> to vector<2x1x32xf32>
    tpu.vector_store %arg4[%c0_20, %c2, %c0_21], %36 {strides = array<i32>} : memref<2x8x32xf32, #tpu.memory_space<vmem>>, vector<2x1x32xf32>,
    %37 = vector.extract_strided_slice %7 {offsets = [0, 3, 0], sizes = [2, 1, 32], strides = [1, 1, 1]} : vector<2x8x32xf32> to vector<2x1x32xf32>
    %38 = vector.shape_cast %37 : vector<2x1x32xf32> to vector<2x32xf32>
    %cst_22 = arith.constant dense<0.000000e+00> : vector<2x32xf32>
    %39 = tpu.matmul %33, %8, %cst_22 {dimension_numbers = #tpu.dot_dimension_numbers<[1], [0], [0], [1], [0, 0, 1, 1], [], []>} : vector<2x32xf32>, vector<32x32xf32>, vector<2x32xf32> -> vector<2x32xf32>
    %40 = arith.addf %38, %39 : vector<2x32xf32>
    %cst_23 = arith.constant 0.000000e+00 : f32
    %41 = vector.broadcast %cst_23 : f32 to vector<2x32xf32>
    %42 = arith.maximumf %40, %41 : vector<2x32xf32>
    %c0_24 = arith.constant 0 : index
    %c3 = arith.constant 3 : index
    %c0_25 = arith.constant 0 : index
    %43 = vector.load %arg4[%c0_24, %c3, %c0_25] : memref<2x8x32xf32, #tpu.memory_space<vmem>>, vector<2x1x32xf32>
    %44 = vector.shape_cast %43 : vector<2x1x32xf32> to vector<2x32xf32>
    %45 = vector.shape_cast %42 : vector<2x32xf32> to vector<2x1x32xf32>
    tpu.vector_store %arg4[%c0_24, %c3, %c0_25], %45 {strides = array<i32>} : memref<2x8x32xf32, #tpu.memory_space<vmem>>, vector<2x1x32xf32>,
    %46 = vector.extract_strided_slice %7 {offsets = [0, 4, 0], sizes = [2, 1, 32], strides = [1, 1, 1]} : vector<2x8x32xf32> to vector<2x1x32xf32>
    %47 = vector.shape_cast %46 : vector<2x1x32xf32> to vector<2x32xf32>
    %cst_26 = arith.constant dense<0.000000e+00> : vector<2x32xf32>
    %48 = tpu.matmul %42, %8, %cst_26 {dimension_numbers = #tpu.dot_dimension_numbers<[1], [0], [0], [1], [0, 0, 1, 1], [], []>} : vector<2x32xf32>, vector<32x32xf32>, vector<2x32xf32> -> vector<2x32xf32>
    %49 = arith.addf %47, %48 : vector<2x32xf32>
    %cst_27 = arith.constant 0.000000e+00 : f32
    %50 = vector.broadcast %cst_27 : f32 to vector<2x32xf32>
    %51 = arith.maximumf %49, %50 : vector<2x32xf32>
    %c0_28 = arith.constant 0 : index
    %c4 = arith.constant 4 : index
    %c0_29 = arith.constant 0 : index
    %52 = vector.load %arg4[%c0_28, %c4, %c0_29] : memref<2x8x32xf32, #tpu.memory_space<vmem>>, vector<2x1x32xf32>
    %53 = vector.shape_cast %52 : vector<2x1x32xf32> to vector<2x32xf32>
    %54 = vector.shape_cast %51 : vector<2x32xf32> to vector<2x1x32xf32>
    tpu.vector_store %arg4[%c0_28, %c4, %c0_29], %54 {strides = array<i32>} : memref<2x8x32xf32, #tpu.memory_space<vmem>>, vector<2x1x32xf32>,
    %55 = vector.extract_strided_slice %7 {offsets = [0, 5, 0], sizes = [2, 1, 32], strides = [1, 1, 1]} : vector<2x8x32xf32> to vector<2x1x32xf32>
    %56 = vector.shape_cast %55 : vector<2x1x32xf32> to vector<2x32xf32>
    %cst_30 = arith.constant dense<0.000000e+00> : vector<2x32xf32>
    %57 = tpu.matmul %51, %8, %cst_30 {dimension_numbers = #tpu.dot_dimension_numbers<[1], [0], [0], [1], [0, 0, 1, 1], [], []>} : vector<2x32xf32>, vector<32x32xf32>, vector<2x32xf32> -> vector<2x32xf32>
    %58 = arith.addf %56, %57 : vector<2x32xf32>
    %cst_31 = arith.constant 0.000000e+00 : f32
    %59 = vector.broadcast %cst_31 : f32 to vector<2x32xf32>
    %60 = arith.maximumf %58, %59 : vector<2x32xf32>
    %c0_32 = arith.constant 0 : index
    %c5 = arith.constant 5 : index
    %c0_33 = arith.constant 0 : index
    %61 = vector.load %arg4[%c0_32, %c5, %c0_33] : memref<2x8x32xf32, #tpu.memory_space<vmem>>, vector<2x1x32xf32>
    %62 = vector.shape_cast %61 : vector<2x1x32xf32> to vector<2x32xf32>
    %63 = vector.shape_cast %60 : vector<2x32xf32> to vector<2x1x32xf32>
    tpu.vector_store %arg4[%c0_32, %c5, %c0_33], %63 {strides = array<i32>} : memref<2x8x32xf32, #tpu.memory_space<vmem>>, vector<2x1x32xf32>,
    %64 = vector.extract_strided_slice %7 {offsets = [0, 6, 0], sizes = [2, 1, 32], strides = [1, 1, 1]} : vector<2x8x32xf32> to vector<2x1x32xf32>
    %65 = vector.shape_cast %64 : vector<2x1x32xf32> to vector<2x32xf32>
    %cst_34 = arith.constant dense<0.000000e+00> : vector<2x32xf32>
    %66 = tpu.matmul %60, %8, %cst_34 {dimension_numbers = #tpu.dot_dimension_numbers<[1], [0], [0], [1], [0, 0, 1, 1], [], []>} : vector<2x32xf32>, vector<32x32xf32>, vector<2x32xf32> -> vector<2x32xf32>
    %67 = arith.addf %65, %66 : vector<2x32xf32>
    %cst_35 = arith.constant 0.000000e+00 : f32
    %68 = vector.broadcast %cst_35 : f32 to vector<2x32xf32>
    %69 = arith.maximumf %67, %68 : vector<2x32xf32>
    %c0_36 = arith.constant 0 : index
    %c6 = arith.constant 6 : index
    %c0_37 = arith.constant 0 : index
    %70 = vector.load %arg4[%c0_36, %c6, %c0_37] : memref<2x8x32xf32, #tpu.memory_space<vmem>>, vector<2x1x32xf32>
    %71 = vector.shape_cast %70 : vector<2x1x32xf32> to vector<2x32xf32>
    %72 = vector.shape_cast %69 : vector<2x32xf32> to vector<2x1x32xf32>
    tpu.vector_store %arg4[%c0_36, %c6, %c0_37], %72 {strides = array<i32>} : memref<2x8x32xf32, #tpu.memory_space<vmem>>, vector<2x1x32xf32>,
    %73 = vector.extract_strided_slice %7 {offsets = [0, 7, 0], sizes = [2, 1, 32], strides = [1, 1, 1]} : vector<2x8x32xf32> to vector<2x1x32xf32>
    %74 = vector.shape_cast %73 : vector<2x1x32xf32> to vector<2x32xf32>
    %cst_38 = arith.constant dense<0.000000e+00> : vector<2x32xf32>
    %75 = tpu.matmul %69, %8, %cst_38 {dimension_numbers = #tpu.dot_dimension_numbers<[1], [0], [0], [1], [0, 0, 1, 1], [], []>} : vector<2x32xf32>, vector<32x32xf32>, vector<2x32xf32> -> vector<2x32xf32>
    %76 = arith.addf %74, %75 : vector<2x32xf32>
    %cst_39 = arith.constant 0.000000e+00 : f32
    %77 = vector.broadcast %cst_39 : f32 to vector<2x32xf32>
    %78 = arith.maximumf %76, %77 : vector<2x32xf32>
    %c0_40 = arith.constant 0 : index
    %c7 = arith.constant 7 : index
    %c0_41 = arith.constant 0 : index
    %79 = vector.load %arg4[%c0_40, %c7, %c0_41] : memref<2x8x32xf32, #tpu.memory_space<vmem>>, vector<2x1x32xf32>
    %80 = vector.shape_cast %79 : vector<2x1x32xf32> to vector<2x32xf32>
    %81 = vector.shape_cast %78 : vector<2x32xf32> to vector<2x1x32xf32>
    tpu.vector_store %arg4[%c0_40, %c7, %c0_41], %81 {strides = array<i32>} : memref<2x8x32xf32, #tpu.memory_space<vmem>>, vector<2x1x32xf32>,
    %c0_42 = arith.constant 0 : index
    %c0_43 = arith.constant 0 : index
    %82 = vector.load %arg5[%c0_42, %c0_43] : memref<2x32xf32, #tpu.memory_space<vmem>>, vector<2x32xf32>
    tpu.vector_store %arg5[%c0_42, %c0_43], %78 {strides = array<i32>} : memref<2x32xf32, #tpu.memory_space<vmem>>, vector<2x32xf32>,
    return
  }
  func.func @transform_0(%arg0: i32) -> (i32, i32, i32) {
    %c0_i32 = arith.constant 0 : i32
    %c0_i32_0 = arith.constant 0 : i32
    %c0_i32_1 = arith.constant 0 : i32
    return %c0_i32, %arg0, %c0_i32_0 : i32, i32, i32
  }
  func.func @transform_1(%arg0: i32) -> (i32, i32) {
    %c0_i32 = arith.constant 0 : i32
    %c0_i32_0 = arith.constant 0 : i32
    %c0_i32_1 = arith.constant 0 : i32
    return %c0_i32, %c0_i32_0 : i32, i32
  }
  func.func @transform_2(%arg0: i32) -> (i32, i32) {
    %c0_i32 = arith.constant 0 : i32
    %c0_i32_0 = arith.constant 0 : i32
    %c0_i32_1 = arith.constant 0 : i32
    return %c0_i32, %c0_i32_0 : i32, i32
  }
  func.func @transform_3(%arg0: i32) -> (i32, i32, i32) {
    %c0_i32 = arith.constant 0 : i32
    %c0_i32_0 = arith.constant 0 : i32
    %c0_i32_1 = arith.constant 0 : i32
    return %c0_i32, %arg0, %c0_i32_0 : i32, i32, i32
  }
}

</mosaic_0001>

<llo_original>
// kernel: tpu_custom_call.1
$region0: #{tpu_custom_call.1}
  #allocation0 [shape = 'u32[]', space=smem, size = 0x4, offset = 0x4, fixed_abs, tag = 'smem constant byte address 0x4 - core index']
  #allocation1 [shape = 'u32[144,128]{1,0:T(1,128)}', space=vmem, size = 0x12000, scoped, tag = 'internal scratch']
  #allocation2 [shape = 'f32[2,32]{1,0:T(2,128)}', space=vmem, size = 0x400, scoped, tag = 'scratch operand']
  %s0 = inlined_call_operand.hbm [shape: f32[2,8,16], index: 0, kind: input, shape index: {}]
  %s1 = inlined_call_operand.hbm [shape: f32[16,32], index: 1, kind: input, shape index: {}]
  %s2 = inlined_call_operand.hbm [shape: f32[32,32], index: 2, kind: input, shape index: {}]
  %s3 = inlined_call_operand.hbm [shape: f32[2,8,32], index: 3, kind: output, shape index: {}]
  %s4 = sld [smem:[#allocation0]]
  $region38: #{tpu_custom_call.1} parent=0
    _
  %s6 = ssub.s32 1, %s4
  %s7 = scalar_select 0, %s6, %s4
  $region1: #{tpu_custom_call.1} parent=0
    #allocation3 [shape = 'u8[8192]{0}', space=vmem, size = 0x2000, scoped, tag = 'input window, operand 0, single buffered']
    #allocation4 [shape = 's32[1]{0}', space=sflag, size = 0x4, scoped, tag = 'scoped memory for tpu_custom_call.1']
    #allocation5 [shape = 's32[1]{0}', space=sflag, size = 0x4, scoped, tag = 'scoped memory for tpu_custom_call.1']
    #allocation6 [shape = 'u8[8192]{0}', space=vmem, size = 0x2000, scoped, tag = 'input window, operand 1, single buffered']
    #allocation7 [shape = 's32[1]{0}', space=sflag, size = 0x4, scoped, tag = 'scoped memory for tpu_custom_call.1']
    #allocation8 [shape = 'u8[16384]{0}', space=vmem, size = 0x4000, scoped, tag = 'input window, operand 2, single buffered']
    #allocation9 [shape = 'u8[8192]{0}', space=vmem, size = 0x2000, scoped, tag = 'output window, operand 0, single buffered']
    %8 = vsyncpa [#allocation4], 0
    %9 = vsyncpa [#allocation7], 0
    %10 = vsyncpa [#allocation5], 0
    // Predicated region
    $region2: #{tpu_custom_call.1} parent=1 // pred_check
      _
    $region3: #{tpu_custom_call.1} parent=1 // pred_check_branch
      %12 = sbr.rel (0) target = $region5
    $region4: #{tpu_custom_call.1} parent=1 // pred_region
      %s14 = ssub.s32 256, 256
      %15 = vsyncadd [#allocation4], %s14
      %s16 = sshll.u32 [#allocation3], 4
      %s17 = int_to_ptr.vmem [resolvable:$true] %s16
      %22 = dma.hbm_to_vmem [thread:$0]  %s0, 256, %s17, [#allocation4], 128, 128, 8
    $region5: #{tpu_custom_call.1} parent=1 // pred_fallthru
      _
    // Predicated region
    $region6: #{tpu_custom_call.1} parent=1 // pred_check
      _
    $region7: #{tpu_custom_call.1} parent=1 // pred_check_branch
      %24 = sbr.rel (0) target = $region9
    $region8: #{tpu_custom_call.1} parent=1 // pred_region
      %s26 = ssub.s32 256, 256
      %27 = vsyncadd [#allocation7], %s26
      %s28 = sshll.u32 [#allocation6], 4
      %s29 = int_to_ptr.vmem [resolvable:$true] %s28
      %34 = dma.hbm_to_vmem [thread:$0]  %s1, 256, %s29, [#allocation7], 128, 128, 8
    $region9: #{tpu_custom_call.1} parent=1 // pred_fallthru
      _
    // Predicated region
    $region10: #{tpu_custom_call.1} parent=1 // pred_check
      _
    $region11: #{tpu_custom_call.1} parent=1 // pred_check_branch
      %36 = sbr.rel (0) target = $region13
    $region12: #{tpu_custom_call.1} parent=1 // pred_region
      %s38 = ssub.s32 512, 512
      %39 = vsyncadd [#allocation7], %s38
      %s40 = sshll.u32 [#allocation8], 4
      %s41 = int_to_ptr.vmem [resolvable:$true] %s40
      %46 = dma.hbm_to_vmem [thread:$0]  %s2, 512, %s41, [#allocation7], 128, 128, 8
    $region13: #{tpu_custom_call.1} parent=1 // pred_fallthru
      _
    // Predicated region
    $region14: #{tpu_custom_call.1} parent=1 // pred_check
      _
    $region15: #{tpu_custom_call.1} parent=1 // pred_check_branch
      %48 = sbr.rel (0) target = $region17
    $region16: #{tpu_custom_call.1} parent=1 // pred_region
      %49 = dma.done [#allocation4], 256
    $region17: #{tpu_custom_call.1} parent=1 // pred_fallthru
      _
    // Predicated region
    $region18: #{tpu_custom_call.1} parent=1 // pred_check
      _
    $region19: #{tpu_custom_call.1} parent=1 // pred_check_branch
      %51 = sbr.rel (0) target = $region21
    $region20: #{tpu_custom_call.1} parent=1 // pred_region
      %52 = dma.done [#allocation7], 256
    $region21: #{tpu_custom_call.1} parent=1 // pred_fallthru
      _
    // Predicated region
    $region22: #{tpu_custom_call.1} parent=1 // pred_check
      _
    $region23: #{tpu_custom_call.1} parent=1 // pred_check_branch
      %54 = sbr.rel (0) target = $region25
    $region24: #{tpu_custom_call.1} parent=1 // pred_region
      %55 = dma.done [#allocation7], 512
    $region25: #{tpu_custom_call.1} parent=1 // pred_fallthru
      _
    %p56 = scmp.eq.s32.totalorder 0, 0
    // Predicated region
    $region26: #{tpu_custom_call.1} parent=1 // pred_check
      %p57 = pneg %p56
    $region27: #{tpu_custom_call.1} parent=1 // pred_check_branch
      %59 = sbr.rel (%p57) target = $region29
    $region28: #{tpu_custom_call.1} parent=1 // pred_region
      %vm60 = vcmask 254976
      %61 = vst.msk [vmem:[#allocation2] sm:$0x3] %vm60, 0.0
    $region29: #{tpu_custom_call.1} parent=1 // pred_fallthru
      _
    %v62 = vld [vmem:[#allocation3] sm:$0xff]
    %v63 = vld [vmem:[#allocation3 + $0x8] sm:$0xff]
    %v64 = vld [vmem:[#allocation6] sm:$0xff]
    %v65 = vld [vmem:[#allocation6 + $0x8] sm:$0xff]
    %vm66 = vcmask 130048
    %v68 = vsel %vm66, %v62, 0
    %v71 = vsel %vm66, %v63, 0
    %73 = vmatprep.subr.mxu0 0.0
    %74 = vmatpush1.msra.mxu0 0.0
    %75 = vmatprep.subr.mxu0 0.0
    %76 = vmatpush1.msra.mxu0 0.0
    %77 = vmatprep.subr.mxu0 0.0
    %78 = vmatpush1.msra.mxu0 0.0
    %79 = vmatprep.subr.mxu0 0.0
    %80 = vmatpush1.msra.mxu0 0.0
    %81 = vmatprep.subr.mxu0 0.0
    %82 = vmatpush1.msra.mxu0 0.0
    %83 = vmatprep.subr.mxu0 0.0
    %84 = vmatpush1.msra.mxu0 0.0
    %85 = vmatprep.subr.mxu0 0.0
    %86 = vmatpush1.msra.mxu0 0.0
    %87 = vmatprep.subr.mxu0 0.0
    %88 = vmatpush1.msra.mxu0 0.0
    %89 = vmatprep.subr.mxu0 0.0
    %90 = vmatpush1.msra.mxu0 0.0
    %91 = vmatprep.subr.mxu0 0.0
    %92 = vmatpush1.msra.mxu0 0.0
    %93 = vmatprep.subr.mxu0 0.0
    %94 = vmatpush1.msra.mxu0 0.0
    %95 = vmatprep.subr.mxu0 0.0
    %96 = vmatpush1.msra.mxu0 0.0
    %97 = vmatprep.subr.mxu0 0.0
    %98 = vmatpush1.msra.mxu0 0.0
    %99 = vmatprep.subr.mxu0 0.0
    %100 = vmatpush1.msra.mxu0 0.0
    %101 = vmatprep.subr.mxu0 0.0
    %102 = vmatpush1.msra.mxu0 %v65
    %103 = vmatprep.subr.mxu0 0.0
    %104 = vmatpush1.msra.mxu0 %v64
    %105 = vmatprep.subr.mxu0 0.0
    %106 = vmatpush2.msra.mxu0 0.0
    %107 = vmatprep.subr.mxu0 0.0
    %108 = vmatpush2.msra.mxu0 0.0
    %109 = vmatprep.subr.mxu0 0.0
    %110 = vmatpush2.msra.mxu0 0.0
    %111 = vmatprep.subr.mxu0 0.0
    %112 = vmatpush2.msra.mxu0 0.0
    %113 = vmatprep.subr.mxu0 0.0
    %114 = vmatpush2.msra.mxu0 0.0
    %115 = vmatprep.subr.mxu0 0.0
    %116 = vmatpush2.msra.mxu0 0.0
    %117 = vmatprep.subr.mxu0 0.0
    %118 = vmatpush2.msra.mxu0 0.0
    %119 = vmatprep.subr.mxu0 0.0
    %120 = vmatpush2.msra.mxu0 0.0
    %121 = vmatprep.subr.mxu0 0.0
    %122 = vmatpush2.msra.mxu0 0.0
    %123 = vmatprep.subr.mxu0 0.0
    %124 = vmatpush2.msra.mxu0 0.0
    %125 = vmatprep.subr.mxu0 0.0
    %126 = vmatpush2.msra.mxu0 0.0
    %127 = vmatprep.subr.mxu0 0.0
    %128 = vmatpush2.msra.mxu0 0.0
    %129 = vmatprep.subr.mxu0 0.0
    %130 = vmatpush2.msra.mxu0 0.0
    %131 = vmatprep.subr.mxu0 0.0
    %132 = vmatpush2.msra.mxu0 0.0
    %133 = vmatprep.subr.mxu0 0.0
    %134 = vmatpush2.msra.mxu0 0.0
    %135 = vmatprep.subr.mxu0 0.0
    %136 = vmatpush2.msra.mxu0 0.0
    %137 = vmatprep.mubr.f32.mxu0 0.0
    %138 = vmatmul.mubr.f32.gmra.mxu0 %v68
    %v139 = vpop.f32.mrf.mxu0
    %v140 = vadd.f32 0.0, %v139
    %v141 = vpop.f32.mrf.mxu0
    %142 = vmatprep.mubr.f32.mxu0 0.0
    %143 = vmatmul.mubr.f32.gmra.mxu0 %v71
    %v144 = vpop.f32.mrf.mxu0
    %v145 = vadd.f32 0.0, %v144
    %v146 = vpop.f32.mrf.mxu0
    %147 = vdwg.mxu0
    %v148 = vld [vmem:[#allocation8] sm:$0xff]
    %v149 = vld [vmem:[#allocation8 + $0x8] sm:$0xff]
    %v150 = vld [vmem:[#allocation8 + $0x10] sm:$0xff]
    %v151 = vld [vmem:[#allocation8 + $0x18] sm:$0xff]
    %v152 = vld [vmem:[#allocation2] sm:$0x3]
    %vm153 = vcmask 261120
    %v155 = vsel %vm153, %v152, 0
    %157 = vmatprep.subr.mxu0 0.0
    %158 = vmatpush1.msra.mxu0 0.0
    %159 = vmatprep.subr.mxu0 0.0
    %160 = vmatpush1.msra.mxu0 0.0
    %161 = vmatprep.subr.mxu0 0.0
    %162 = vmatpush1.msra.mxu0 0.0
    %163 = vmatprep.subr.mxu0 0.0
    %164 = vmatpush1.msra.mxu0 0.0
    %165 = vmatprep.subr.mxu0 0.0
    %166 = vmatpush1.msra.mxu0 0.0
    %167 = vmatprep.subr.mxu0 0.0
    %168 = vmatpush1.msra.mxu0 0.0
    %169 = vmatprep.subr.mxu0 0.0
    %170 = vmatpush1.msra.mxu0 0.0
    %171 = vmatprep.subr.mxu0 0.0
    %172 = vmatpush1.msra.mxu0 0.0
    %173 = vmatprep.subr.mxu0 0.0
    %174 = vmatpush1.msra.mxu0 0.0
    %175 = vmatprep.subr.mxu0 0.0
    %176 = vmatpush1.msra.mxu0 0.0
    %177 = vmatprep.subr.mxu0 0.0
    %178 = vmatpush1.msra.mxu0 0.0
    %179 = vmatprep.subr.mxu0 0.0
    %180 = vmatpush1.msra.mxu0 0.0
    %181 = vmatprep.subr.mxu0 0.0
    %182 = vmatpush1.msra.mxu0 %v151
    %183 = vmatprep.subr.mxu0 0.0
    %184 = vmatpush1.msra.mxu0 %v150
    %185 = vmatprep.subr.mxu0 0.0
    %186 = vmatpush1.msra.mxu0 %v149
    %187 = vmatprep.subr.mxu0 0.0
    %188 = vmatpush1.msra.mxu0 %v148
    %189 = vmatprep.subr.mxu0 0.0
    %190 = vmatpush2.msra.mxu0 0.0
    %191 = vmatprep.subr.mxu0 0.0
    %192 = vmatpush2.msra.mxu0 0.0
    %193 = vmatprep.subr.mxu0 0.0
    %194 = vmatpush2.msra.mxu0 0.0
    %195 = vmatprep.subr.mxu0 0.0
    %196 = vmatpush2.msra.mxu0 0.0
    %197 = vmatprep.subr.mxu0 0.0
    %198 = vmatpush2.msra.mxu0 0.0
    %199 = vmatprep.subr.mxu0 0.0
    %200 = vmatpush2.msra.mxu0 0.0
    %201 = vmatprep.subr.mxu0 0.0
    %202 = vmatpush2.msra.mxu0 0.0
    %203 = vmatprep.subr.mxu0 0.0
    %204 = vmatpush2.msra.mxu0 0.0
    %205 = vmatprep.subr.mxu0 0.0
    %206 = vmatpush2.msra.mxu0 0.0
    %207 = vmatprep.subr.mxu0 0.0
    %208 = vmatpush2.msra.mxu0 0.0
    %209 = vmatprep.subr.mxu0 0.0
    %210 = vmatpush2.msra.mxu0 0.0
    %211 = vmatprep.subr.mxu0 0.0
    %212 = vmatpush2.msra.mxu0 0.0
    %213 = vmatprep.subr.mxu0 0.0
    %214 = vmatpush2.msra.mxu0 0.0
    %215 = vmatprep.subr.mxu0 0.0
    %216 = vmatpush2.msra.mxu0 0.0
    %217 = vmatprep.subr.mxu0 0.0
    %218 = vmatpush2.msra.mxu0 0.0
    %219 = vmatprep.subr.mxu0 0.0
    %220 = vmatpush2.msra.mxu0 0.0
    %221 = vmatprep.mubr.f32.mxu0 0.0
    %222 = vmatmul.mubr.f32.gmra.mxu0 %v155
    %v223 = vpop.f32.mrf.mxu0
    %v224 = vadd.f32 0.0, %v223
    %v225 = vpop.f32.mrf.mxu0
    %226 = vdwg.mxu0
    %v228 = vrot.slane %v224, 1
    %v231 = vadd.f32 %v140, %v224
    %v232 = vadd.f32 %v145, %v228
    %v233 = vmax.f32 %v231, 0.0
    %v234 = vmax.f32 %v232, 0.0
    %vm235 = vcmask 253952
    %236 = vst.msk [vmem:[#allocation9] sm:$0x1] %vm235, %v233
    %237 = vst.msk [vmem:[#allocation9 + $0x8] sm:$0x1] %vm235, %v234
    %v240 = vrot.slane %v234, 7
    %vm241 = vcmask 1041409
    %v242 = vsel %vm241, %v240, %v233
    %v243 = vsel %vm153, %v242, 0
    %245 = vmatprep.subr.mxu0 0.0
    %246 = vmatpush1.msra.mxu0 0.0
    %247 = vmatprep.subr.mxu0 0.0
    %248 = vmatpush1.msra.mxu0 0.0
    %249 = vmatprep.subr.mxu0 0.0
    %250 = vmatpush1.msra.mxu0 0.0
    %251 = vmatprep.subr.mxu0 0.0
    %252 = vmatpush1.msra.mxu0 0.0
    %253 = vmatprep.subr.mxu0 0.0
    %254 = vmatpush1.msra.mxu0 0.0
    %255 = vmatprep.subr.mxu0 0.0
    %256 = vmatpush1.msra.mxu0 0.0
    %257 = vmatprep.subr.mxu0 0.0
    %258 = vmatpush1.msra.mxu0 0.0
    %259 = vmatprep.subr.mxu0 0.0
    %260 = vmatpush1.msra.mxu0 0.0
    %261 = vmatprep.subr.mxu0 0.0
    %262 = vmatpush1.msra.mxu0 0.0
    %263 = vmatprep.subr.mxu0 0.0
    %264 = vmatpush1.msra.mxu0 0.0
    %265 = vmatprep.subr.mxu0 0.0
    %266 = vmatpush1.msra.mxu0 0.0
    %267 = vmatprep.subr.mxu0 0.0
    %268 = vmatpush1.msra.mxu0 0.0
    %269 = vmatprep.subr.mxu0 0.0
    %270 = vmatpush1.msra.mxu0 %v151
    %271 = vmatprep.subr.mxu0 0.0
    %272 = vmatpush1.msra.mxu0 %v150
    %273 = vmatprep.subr.mxu0 0.0
    %274 = vmatpush1.msra.mxu0 %v149
    %275 = vmatprep.subr.mxu0 0.0
    %276 = vmatpush1.msra.mxu0 %v148
    %277 = vmatprep.subr.mxu0 0.0
    %278 = vmatpush2.msra.mxu0 0.0
    %279 = vmatprep.subr.mxu0 0.0
    %280 = vmatpush2.msra.mxu0 0.0
    %281 = vmatprep.subr.mxu0 0.0
    %282 = vmatpush2.msra.mxu0 0.0
    %283 = vmatprep.subr.mxu0 0.0
    %284 = vmatpush2.msra.mxu0 0.0
    %285 = vmatprep.subr.mxu0 0.0
    %286 = vmatpush2.msra.mxu0 0.0
    %287 = vmatprep.subr.mxu0 0.0
    %288 = vmatpush2.msra.mxu0 0.0
    %289 = vmatprep.subr.mxu0 0.0
    %290 = vmatpush2.msra.mxu0 0.0
    %291 = vmatprep.subr.mxu0 0.0
    %292 = vmatpush2.msra.mxu0 0.0
    %293 = vmatprep.subr.mxu0 0.0
    %294 = vmatpush2.msra.mxu0 0.0
    %295 = vmatprep.subr.mxu0 0.0
    %296 = vmatpush2.msra.mxu0 0.0
    %297 = vmatprep.subr.mxu0 0.0
    %298 = vmatpush2.msra.mxu0 0.0
    %299 = vmatprep.subr.mxu0 0.0
    %300 = vmatpush2.msra.mxu0 0.0
    %301 = vmatprep.subr.mxu0 0.0
    %302 = vmatpush2.msra.mxu0 0.0
    %303 = vmatprep.subr.mxu0 0.0
    %304 = vmatpush2.msra.mxu0 0.0
    %305 = vmatprep.subr.mxu0 0.0
    %306 = vmatpush2.msra.mxu0 0.0
    %307 = vmatprep.subr.mxu0 0.0
    %308 = vmatpush2.msra.mxu0 0.0
    %309 = vmatprep.mubr.f32.mxu0 0.0
    %310 = vmatmul.mubr.f32.gmra.mxu0 %v243
    %v311 = vpop.f32.mrf.mxu0
    %v312 = vadd.f32 0.0, %v311
    %v313 = vpop.f32.mrf.mxu0
    %314 = vdwg.mxu0
    %v316 = vrot.slane %v312, 7
    %v319 = vadd.f32 %v140, %v316
    %v320 = vadd.f32 %v145, %v312
    %v321 = vmax.f32 %v319, 0.0
    %v322 = vmax.f32 %v320, 0.0
    %vm323 = vcmask 254977
    %324 = vst.msk [vmem:[#allocation9] sm:$0x2] %vm323, %v321
    %325 = vst.msk [vmem:[#allocation9 + $0x8] sm:$0x2] %vm323, %v322
    %v328 = vrot.slane %v321, 1
    %v329 = vsel %vm241, %v322, %v328
    %v330 = vsel %vm153, %v329, 0
    %332 = vmatprep.subr.mxu0 0.0
    %333 = vmatpush1.msra.mxu0 0.0
    %334 = vmatprep.subr.mxu0 0.0
    %335 = vmatpush1.msra.mxu0 0.0
    %336 = vmatprep.subr.mxu0 0.0
    %337 = vmatpush1.msra.mxu0 0.0
    %338 = vmatprep.subr.mxu0 0.0
    %339 = vmatpush1.msra.mxu0 0.0
    %340 = vmatprep.subr.mxu0 0.0
    %341 = vmatpush1.msra.mxu0 0.0
    %342 = vmatprep.subr.mxu0 0.0
    %343 = vmatpush1.msra.mxu0 0.0
    %344 = vmatprep.subr.mxu0 0.0
    %345 = vmatpush1.msra.mxu0 0.0
    %346 = vmatprep.subr.mxu0 0.0
    %347 = vmatpush1.msra.mxu0 0.0
    %348 = vmatprep.subr.mxu0 0.0
    %349 = vmatpush1.msra.mxu0 0.0
    %350 = vmatprep.subr.mxu0 0.0
    %351 = vmatpush1.msra.mxu0 0.0
    %352 = vmatprep.subr.mxu0 0.0
    %353 = vmatpush1.msra.mxu0 0.0
    %354 = vmatprep.subr.mxu0 0.0
    %355 = vmatpush1.msra.mxu0 0.0
    %356 = vmatprep.subr.mxu0 0.0
    %357 = vmatpush1.msra.mxu0 %v151
    %358 = vmatprep.subr.mxu0 0.0
    %359 = vmatpush1.msra.mxu0 %v150
    %360 = vmatprep.subr.mxu0 0.0
    %361 = vmatpush1.msra.mxu0 %v149
    %362 = vmatprep.subr.mxu0 0.0
    %363 = vmatpush1.msra.mxu0 %v148
    %364 = vmatprep.subr.mxu0 0.0
    %365 = vmatpush2.msra.mxu0 0.0
    %366 = vmatprep.subr.mxu0 0.0
    %367 = vmatpush2.msra.mxu0 0.0
    %368 = vmatprep.subr.mxu0 0.0
    %369 = vmatpush2.msra.mxu0 0.0
    %370 = vmatprep.subr.mxu0 0.0
    %371 = vmatpush2.msra.mxu0 0.0
    %372 = vmatprep.subr.mxu0 0.0
    %373 = vmatpush2.msra.mxu0 0.0
    %374 = vmatprep.subr.mxu0 0.0
    %375 = vmatpush2.msra.mxu0 0.0
    %376 = vmatprep.subr.mxu0 0.0
    %377 = vmatpush2.msra.mxu0 0.0
    %378 = vmatprep.subr.mxu0 0.0
    %379 = vmatpush2.msra.mxu0 0.0
    %380 = vmatprep.subr.mxu0 0.0
    %381 = vmatpush2.msra.mxu0 0.0
    %382 = vmatprep.subr.mxu0 0.0
    %383 = vmatpush2.msra.mxu0 0.0
    %384 = vmatprep.subr.mxu0 0.0
    %385 = vmatpush2.msra.mxu0 0.0
    %386 = vmatprep.subr.mxu0 0.0
    %387 = vmatpush2.msra.mxu0 0.0
    %388 = vmatprep.subr.mxu0 0.0
    %389 = vmatpush2.msra.mxu0 0.0
    %390 = vmatprep.subr.mxu0 0.0
    %391 = vmatpush2.msra.mxu0 0.0
    %392 = vmatprep.subr.mxu0 0.0
    %393 = vmatpush2.msra.mxu0 0.0
    %394 = vmatprep.subr.mxu0 0.0
    %395 = vmatpush2.msra.mxu0 0.0
    %396 = vmatprep.mubr.f32.mxu0 0.0
    %397 = vmatmul.mubr.f32.gmra.mxu0 %v330
    %v398 = vpop.f32.mrf.mxu0
    %v399 = vadd.f32 0.0, %v398
    %v400 = vpop.f32.mrf.mxu0
    %401 = vdwg.mxu0
    %v403 = vrot.slane %v399, 6
    %v404 = vrot.slane %v399, 7
    %v407 = vadd.f32 %v140, %v403
    %v408 = vadd.f32 %v145, %v404
    %v409 = vmax.f32 %v407, 0.0
    %v410 = vmax.f32 %v408, 0.0
    %vm411 = vcmask 256002
    %412 = vst.msk [vmem:[#allocation9] sm:$0x4] %vm411, %v409
    %413 = vst.msk [vmem:[#allocation9 + $0x8] sm:$0x4] %vm411, %v410
    %v416 = vrot.slane %v409, 2
    %v417 = vrot.slane %v410, 1
    %v418 = vsel %vm241, %v417, %v416
    %v419 = vsel %vm153, %v418, 0
    %421 = vmatprep.subr.mxu0 0.0
    %422 = vmatpush1.msra.mxu0 0.0
    %423 = vmatprep.subr.mxu0 0.0
    %424 = vmatpush1.msra.mxu0 0.0
    %425 = vmatprep.subr.mxu0 0.0
    %426 = vmatpush1.msra.mxu0 0.0
    %427 = vmatprep.subr.mxu0 0.0
    %428 = vmatpush1.msra.mxu0 0.0
    %429 = vmatprep.subr.mxu0 0.0
    %430 = vmatpush1.msra.mxu0 0.0
    %431 = vmatprep.subr.mxu0 0.0
    %432 = vmatpush1.msra.mxu0 0.0
    %433 = vmatprep.subr.mxu0 0.0
    %434 = vmatpush1.msra.mxu0 0.0
    %435 = vmatprep.subr.mxu0 0.0
    %436 = vmatpush1.msra.mxu0 0.0
    %437 = vmatprep.subr.mxu0 0.0
    %438 = vmatpush1.msra.mxu0 0.0
    %439 = vmatprep.subr.mxu0 0.0
    %440 = vmatpush1.msra.mxu0 0.0
    %441 = vmatprep.subr.mxu0 0.0
    %442 = vmatpush1.msra.mxu0 0.0
    %443 = vmatprep.subr.mxu0 0.0
    %444 = vmatpush1.msra.mxu0 0.0
    %445 = vmatprep.subr.mxu0 0.0
    %446 = vmatpush1.msra.mxu0 %v151
    %447 = vmatprep.subr.mxu0 0.0
    %448 = vmatpush1.msra.mxu0 %v150
    %449 = vmatprep.subr.mxu0 0.0
    %450 = vmatpush1.msra.mxu0 %v149
    %451 = vmatprep.subr.mxu0 0.0
    %452 = vmatpush1.msra.mxu0 %v148
    %453 = vmatprep.subr.mxu0 0.0
    %454 = vmatpush2.msra.mxu0 0.0
    %455 = vmatprep.subr.mxu0 0.0
    %456 = vmatpush2.msra.mxu0 0.0
    %457 = vmatprep.subr.mxu0 0.0
    %458 = vmatpush2.msra.mxu0 0.0
    %459 = vmatprep.subr.mxu0 0.0
    %460 = vmatpush2.msra.mxu0 0.0
    %461 = vmatprep.subr.mxu0 0.0
    %462 = vmatpush2.msra.mxu0 0.0
    %463 = vmatprep.subr.mxu0 0.0
    %464 = vmatpush2.msra.mxu0 0.0
    %465 = vmatprep.subr.mxu0 0.0
    %466 = vmatpush2.msra.mxu0 0.0
    %467 = vmatprep.subr.mxu0 0.0
    %468 = vmatpush2.msra.mxu0 0.0
    %469 = vmatprep.subr.mxu0 0.0
    %470 = vmatpush2.msra.mxu0 0.0
    %471 = vmatprep.subr.mxu0 0.0
    %472 = vmatpush2.msra.mxu0 0.0
    %473 = vmatprep.subr.mxu0 0.0
    %474 = vmatpush2.msra.mxu0 0.0
    %475 = vmatprep.subr.mxu0 0.0
    %476 = vmatpush2.msra.mxu0 0.0
    %477 = vmatprep.subr.mxu0 0.0
    %478 = vmatpush2.msra.mxu0 0.0
    %479 = vmatprep.subr.mxu0 0.0
    %480 = vmatpush2.msra.mxu0 0.0
    %481 = vmatprep.subr.mxu0 0.0
    %482 = vmatpush2.msra.mxu0 0.0
    %483 = vmatprep.subr.mxu0 0.0
    %484 = vmatpush2.msra.mxu0 0.0
    %485 = vmatprep.mubr.f32.mxu0 0.0
    %486 = vmatmul.mubr.f32.gmra.mxu0 %v419
    %v487 = vpop.f32.mrf.mxu0
    %v488 = vadd.f32 0.0, %v487
    %v489 = vpop.f32.mrf.mxu0
    %490 = vdwg.mxu0
    %v492 = vrot.slane %v488, 5
    %v493 = vrot.slane %v488, 6
    %v496 = vadd.f32 %v140, %v492
    %v497 = vadd.f32 %v145, %v493
    %v498 = vmax.f32 %v496, 0.0
    %v499 = vmax.f32 %v497, 0.0
    %vm500 = vcmask 257027
    %501 = vst.msk [vmem:[#allocation9] sm:$0x8] %vm500, %v498
    %502 = vst.msk [vmem:[#allocation9 + $0x8] sm:$0x8] %vm500, %v499
    %v505 = vrot.slane %v498, 3
    %v506 = vrot.slane %v499, 2
    %v507 = vsel %vm241, %v506, %v505
    %v508 = vsel %vm153, %v507, 0
    %510 = vmatprep.subr.mxu0 0.0
    %511 = vmatpush1.msra.mxu0 0.0
    %512 = vmatprep.subr.mxu0 0.0
    %513 = vmatpush1.msra.mxu0 0.0
    %514 = vmatprep.subr.mxu0 0.0
    %515 = vmatpush1.msra.mxu0 0.0
    %516 = vmatprep.subr.mxu0 0.0
    %517 = vmatpush1.msra.mxu0 0.0
    %518 = vmatprep.subr.mxu0 0.0
    %519 = vmatpush1.msra.mxu0 0.0
    %520 = vmatprep.subr.mxu0 0.0
    %521 = vmatpush1.msra.mxu0 0.0
    %522 = vmatprep.subr.mxu0 0.0
    %523 = vmatpush1.msra.mxu0 0.0
    %524 = vmatprep.subr.mxu0 0.0
    %525 = vmatpush1.msra.mxu0 0.0
    %526 = vmatprep.subr.mxu0 0.0
    %527 = vmatpush1.msra.mxu0 0.0
    %528 = vmatprep.subr.mxu0 0.0
    %529 = vmatpush1.msra.mxu0 0.0
    %530 = vmatprep.subr.mxu0 0.0
    %531 = vmatpush1.msra.mxu0 0.0
    %532 = vmatprep.subr.mxu0 0.0
    %533 = vmatpush1.msra.mxu0 0.0
    %534 = vmatprep.subr.mxu0 0.0
    %535 = vmatpush1.msra.mxu0 %v151
    %536 = vmatprep.subr.mxu0 0.0
    %537 = vmatpush1.msra.mxu0 %v150
    %538 = vmatprep.subr.mxu0 0.0
    %539 = vmatpush1.msra.mxu0 %v149
    %540 = vmatprep.subr.mxu0 0.0
    %541 = vmatpush1.msra.mxu0 %v148
    %542 = vmatprep.subr.mxu0 0.0
    %543 = vmatpush2.msra.mxu0 0.0
    %544 = vmatprep.subr.mxu0 0.0
    %545 = vmatpush2.msra.mxu0 0.0
    %546 = vmatprep.subr.mxu0 0.0
    %547 = vmatpush2.msra.mxu0 0.0
    %548 = vmatprep.subr.mxu0 0.0
    %549 = vmatpush2.msra.mxu0 0.0
    %550 = vmatprep.subr.mxu0 0.0
    %551 = vmatpush2.msra.mxu0 0.0
    %552 = vmatprep.subr.mxu0 0.0
    %553 = vmatpush2.msra.mxu0 0.0
    %554 = vmatprep.subr.mxu0 0.0
    %555 = vmatpush2.msra.mxu0 0.0
    %556 = vmatprep.subr.mxu0 0.0
    %557 = vmatpush2.msra.mxu0 0.0
    %558 = vmatprep.subr.mxu0 0.0
    %559 = vmatpush2.msra.mxu0 0.0
    %560 = vmatprep.subr.mxu0 0.0
    %561 = vmatpush2.msra.mxu0 0.0
    %562 = vmatprep.subr.mxu0 0.0
    %563 = vmatpush2.msra.mxu0 0.0
    %564 = vmatprep.subr.mxu0 0.0
    %565 = vmatpush2.msra.mxu0 0.0
    %566 = vmatprep.subr.mxu0 0.0
    %567 = vmatpush2.msra.mxu0 0.0
    %568 = vmatprep.subr.mxu0 0.0
    %569 = vmatpush2.msra.mxu0 0.0
    %570 = vmatprep.subr.mxu0 0.0
    %571 = vmatpush2.msra.mxu0 0.0
    %572 = vmatprep.subr.mxu0 0.0
    %573 = vmatpush2.msra.mxu0 0.0
    %574 = vmatprep.mubr.f32.mxu0 0.0
    %575 = vmatmul.mubr.f32.gmra.mxu0 %v508
    %v576 = vpop.f32.mrf.mxu0
    %v577 = vadd.f32 0.0, %v576
    %v578 = vpop.f32.mrf.mxu0
    %579 = vdwg.mxu0
    %v581 = vrot.slane %v577, 4
    %v582 = vrot.slane %v577, 5
    %v585 = vadd.f32 %v140, %v581
    %v586 = vadd.f32 %v145, %v582
    %v587 = vmax.f32 %v585, 0.0
    %v588 = vmax.f32 %v586, 0.0
    %vm589 = vcmask 258052
    %590 = vst.msk [vmem:[#allocation9] sm:$0x10] %vm589, %v587
    %591 = vst.msk [vmem:[#allocation9 + $0x8] sm:$0x10] %vm589, %v588
    %v594 = vrot.slane %v587, 4
    %v595 = vrot.slane %v588, 3
    %v596 = vsel %vm241, %v595, %v594
    %v597 = vsel %vm153, %v596, 0
    %599 = vmatprep.subr.mxu0 0.0
    %600 = vmatpush1.msra.mxu0 0.0
    %601 = vmatprep.subr.mxu0 0.0
    %602 = vmatpush1.msra.mxu0 0.0
    %603 = vmatprep.subr.mxu0 0.0
    %604 = vmatpush1.msra.mxu0 0.0
    %605 = vmatprep.subr.mxu0 0.0
    %606 = vmatpush1.msra.mxu0 0.0
    %607 = vmatprep.subr.mxu0 0.0
    %608 = vmatpush1.msra.mxu0 0.0
    %609 = vmatprep.subr.mxu0 0.0
    %610 = vmatpush1.msra.mxu0 0.0
    %611 = vmatprep.subr.mxu0 0.0
    %612 = vmatpush1.msra.mxu0 0.0
    %613 = vmatprep.subr.mxu0 0.0
    %614 = vmatpush1.msra.mxu0 0.0
    %615 = vmatprep.subr.mxu0 0.0
    %616 = vmatpush1.msra.mxu0 0.0
    %617 = vmatprep.subr.mxu0 0.0
    %618 = vmatpush1.msra.mxu0 0.0
    %619 = vmatprep.subr.mxu0 0.0
    %620 = vmatpush1.msra.mxu0 0.0
    %621 = vmatprep.subr.mxu0 0.0
    %622 = vmatpush1.msra.mxu0 0.0
    %623 = vmatprep.subr.mxu0 0.0
    %624 = vmatpush1.msra.mxu0 %v151
    %625 = vmatprep.subr.mxu0 0.0
    %626 = vmatpush1.msra.mxu0 %v150
    %627 = vmatprep.subr.mxu0 0.0
    %628 = vmatpush1.msra.mxu0 %v149
    %629 = vmatprep.subr.mxu0 0.0
    %630 = vmatpush1.msra.mxu0 %v148
    %631 = vmatprep.subr.mxu0 0.0
    %632 = vmatpush2.msra.mxu0 0.0
    %633 = vmatprep.subr.mxu0 0.0
    %634 = vmatpush2.msra.mxu0 0.0
    %635 = vmatprep.subr.mxu0 0.0
    %636 = vmatpush2.msra.mxu0 0.0
    %637 = vmatprep.subr.mxu0 0.0
    %638 = vmatpush2.msra.mxu0 0.0
    %639 = vmatprep.subr.mxu0 0.0
    %640 = vmatpush2.msra.mxu0 0.0
    %641 = vmatprep.subr.mxu0 0.0
    %642 = vmatpush2.msra.mxu0 0.0
    %643 = vmatprep.subr.mxu0 0.0
    %644 = vmatpush2.msra.mxu0 0.0
    %645 = vmatprep.subr.mxu0 0.0
    %646 = vmatpush2.msra.mxu0 0.0
    %647 = vmatprep.subr.mxu0 0.0
    %648 = vmatpush2.msra.mxu0 0.0
    %649 = vmatprep.subr.mxu0 0.0
    %650 = vmatpush2.msra.mxu0 0.0
    %651 = vmatprep.subr.mxu0 0.0
    %652 = vmatpush2.msra.mxu0 0.0
    %653 = vmatprep.subr.mxu0 0.0
    %654 = vmatpush2.msra.mxu0 0.0
    %655 = vmatprep.subr.mxu0 0.0
    %656 = vmatpush2.msra.mxu0 0.0
    %657 = vmatprep.subr.mxu0 0.0
    %658 = vmatpush2.msra.mxu0 0.0
    %659 = vmatprep.subr.mxu0 0.0
    %660 = vmatpush2.msra.mxu0 0.0
    %661 = vmatprep.subr.mxu0 0.0
    %662 = vmatpush2.msra.mxu0 0.0
    %663 = vmatprep.mubr.f32.mxu0 0.0
    %664 = vmatmul.mubr.f32.gmra.mxu0 %v597
    %v665 = vpop.f32.mrf.mxu0
    %v666 = vadd.f32 0.0, %v665
    %v667 = vpop.f32.mrf.mxu0
    %668 = vdwg.mxu0
    %v670 = vrot.slane %v666, 3
    %v671 = vrot.slane %v666, 4
    %v674 = vadd.f32 %v140, %v670
    %v675 = vadd.f32 %v145, %v671
    %v676 = vmax.f32 %v674, 0.0
    %v677 = vmax.f32 %v675, 0.0
    %vm678 = vcmask 259077
    %679 = vst.msk [vmem:[#allocation9] sm:$0x20] %vm678, %v676
    %680 = vst.msk [vmem:[#allocation9 + $0x8] sm:$0x20] %vm678, %v677
    %v683 = vrot.slane %v676, 5
    %v684 = vrot.slane %v677, 4
    %v685 = vsel %vm241, %v684, %v683
    %v686 = vsel %vm153, %v685, 0
    %688 = vmatprep.subr.mxu0 0.0
    %689 = vmatpush1.msra.mxu0 0.0
    %690 = vmatprep.subr.mxu0 0.0
    %691 = vmatpush1.msra.mxu0 0.0
    %692 = vmatprep.subr.mxu0 0.0
    %693 = vmatpush1.msra.mxu0 0.0
    %694 = vmatprep.subr.mxu0 0.0
    %695 = vmatpush1.msra.mxu0 0.0
    %696 = vmatprep.subr.mxu0 0.0
    %697 = vmatpush1.msra.mxu0 0.0
    %698 = vmatprep.subr.mxu0 0.0
    %699 = vmatpush1.msra.mxu0 0.0
    %700 = vmatprep.subr.mxu0 0.0
    %701 = vmatpush1.msra.mxu0 0.0
    %702 = vmatprep.subr.mxu0 0.0
    %703 = vmatpush1.msra.mxu0 0.0
    %704 = vmatprep.subr.mxu0 0.0
    %705 = vmatpush1.msra.mxu0 0.0
    %706 = vmatprep.subr.mxu0 0.0
    %707 = vmatpush1.msra.mxu0 0.0
    %708 = vmatprep.subr.mxu0 0.0
    %709 = vmatpush1.msra.mxu0 0.0
    %710 = vmatprep.subr.mxu0 0.0
    %711 = vmatpush1.msra.mxu0 0.0
    %712 = vmatprep.subr.mxu0 0.0
    %713 = vmatpush1.msra.mxu0 %v151
    %714 = vmatprep.subr.mxu0 0.0
    %715 = vmatpush1.msra.mxu0 %v150
    %716 = vmatprep.subr.mxu0 0.0
    %717 = vmatpush1.msra.mxu0 %v149
    %718 = vmatprep.subr.mxu0 0.0
    %719 = vmatpush1.msra.mxu0 %v148
    %720 = vmatprep.subr.mxu0 0.0
    %721 = vmatpush2.msra.mxu0 0.0
    %722 = vmatprep.subr.mxu0 0.0
    %723 = vmatpush2.msra.mxu0 0.0
    %724 = vmatprep.subr.mxu0 0.0
    %725 = vmatpush2.msra.mxu0 0.0
    %726 = vmatprep.subr.mxu0 0.0
    %727 = vmatpush2.msra.mxu0 0.0
    %728 = vmatprep.subr.mxu0 0.0
    %729 = vmatpush2.msra.mxu0 0.0
    %730 = vmatprep.subr.mxu0 0.0
    %731 = vmatpush2.msra.mxu0 0.0
    %732 = vmatprep.subr.mxu0 0.0
    %733 = vmatpush2.msra.mxu0 0.0
    %734 = vmatprep.subr.mxu0 0.0
    %735 = vmatpush2.msra.mxu0 0.0
    %736 = vmatprep.subr.mxu0 0.0
    %737 = vmatpush2.msra.mxu0 0.0
    %738 = vmatprep.subr.mxu0 0.0
    %739 = vmatpush2.msra.mxu0 0.0
    %740 = vmatprep.subr.mxu0 0.0
    %741 = vmatpush2.msra.mxu0 0.0
    %742 = vmatprep.subr.mxu0 0.0
    %743 = vmatpush2.msra.mxu0 0.0
    %744 = vmatprep.subr.mxu0 0.0
    %745 = vmatpush2.msra.mxu0 0.0
    %746 = vmatprep.subr.mxu0 0.0
    %747 = vmatpush2.msra.mxu0 0.0
    %748 = vmatprep.subr.mxu0 0.0
    %749 = vmatpush2.msra.mxu0 0.0
    %750 = vmatprep.subr.mxu0 0.0
    %751 = vmatpush2.msra.mxu0 0.0
    %752 = vmatprep.mubr.f32.mxu0 0.0
    %753 = vmatmul.mubr.f32.gmra.mxu0 %v686
    %v754 = vpop.f32.mrf.mxu0
    %v755 = vadd.f32 0.0, %v754
    %v756 = vpop.f32.mrf.mxu0
    %757 = vdwg.mxu0
    %v759 = vrot.slane %v755, 2
    %v760 = vrot.slane %v755, 3
    %v763 = vadd.f32 %v140, %v759
    %v764 = vadd.f32 %v145, %v760
    %v765 = vmax.f32 %v763, 0.0
    %v766 = vmax.f32 %v764, 0.0
    %vm767 = vcmask 260102
    %768 = vst.msk [vmem:[#allocation9] sm:$0x40] %vm767, %v765
    %769 = vst.msk [vmem:[#allocation9 + $0x8] sm:$0x40] %vm767, %v766
    %v772 = vrot.slane %v765, 6
    %v773 = vrot.slane %v766, 5
    %v774 = vsel %vm241, %v773, %v772
    %v775 = vsel %vm153, %v774, 0
    %777 = vmatprep.subr.mxu0 0.0
    %778 = vmatpush1.msra.mxu0 0.0
    %779 = vmatprep.subr.mxu0 0.0
    %780 = vmatpush1.msra.mxu0 0.0
    %781 = vmatprep.subr.mxu0 0.0
    %782 = vmatpush1.msra.mxu0 0.0
    %783 = vmatprep.subr.mxu0 0.0
    %784 = vmatpush1.msra.mxu0 0.0
    %785 = vmatprep.subr.mxu0 0.0
    %786 = vmatpush1.msra.mxu0 0.0
    %787 = vmatprep.subr.mxu0 0.0
    %788 = vmatpush1.msra.mxu0 0.0
    %789 = vmatprep.subr.mxu0 0.0
    %790 = vmatpush1.msra.mxu0 0.0
    %791 = vmatprep.subr.mxu0 0.0
    %792 = vmatpush1.msra.mxu0 0.0
    %793 = vmatprep.subr.mxu0 0.0
    %794 = vmatpush1.msra.mxu0 0.0
    %795 = vmatprep.subr.mxu0 0.0
    %796 = vmatpush1.msra.mxu0 0.0
    %797 = vmatprep.subr.mxu0 0.0
    %798 = vmatpush1.msra.mxu0 0.0
    %799 = vmatprep.subr.mxu0 0.0
    %800 = vmatpush1.msra.mxu0 0.0
    %801 = vmatprep.subr.mxu0 0.0
    %802 = vmatpush1.msra.mxu0 %v151
    %803 = vmatprep.subr.mxu0 0.0
    %804 = vmatpush1.msra.mxu0 %v150
    %805 = vmatprep.subr.mxu0 0.0
    %806 = vmatpush1.msra.mxu0 %v149
    %807 = vmatprep.subr.mxu0 0.0
    %808 = vmatpush1.msra.mxu0 %v148
    %809 = vmatprep.subr.mxu0 0.0
    %810 = vmatpush2.msra.mxu0 0.0
    %811 = vmatprep.subr.mxu0 0.0
    %812 = vmatpush2.msra.mxu0 0.0
    %813 = vmatprep.subr.mxu0 0.0
    %814 = vmatpush2.msra.mxu0 0.0
    %815 = vmatprep.subr.mxu0 0.0
    %816 = vmatpush2.msra.mxu0 0.0
    %817 = vmatprep.subr.mxu0 0.0
    %818 = vmatpush2.msra.mxu0 0.0
    %819 = vmatprep.subr.mxu0 0.0
    %820 = vmatpush2.msra.mxu0 0.0
    %821 = vmatprep.subr.mxu0 0.0
    %822 = vmatpush2.msra.mxu0 0.0
    %823 = vmatprep.subr.mxu0 0.0
    %824 = vmatpush2.msra.mxu0 0.0
    %825 = vmatprep.subr.mxu0 0.0
    %826 = vmatpush2.msra.mxu0 0.0
    %827 = vmatprep.subr.mxu0 0.0
    %828 = vmatpush2.msra.mxu0 0.0
    %829 = vmatprep.subr.mxu0 0.0
    %830 = vmatpush2.msra.mxu0 0.0
    %831 = vmatprep.subr.mxu0 0.0
    %832 = vmatpush2.msra.mxu0 0.0
    %833 = vmatprep.subr.mxu0 0.0
    %834 = vmatpush2.msra.mxu0 0.0
    %835 = vmatprep.subr.mxu0 0.0
    %836 = vmatpush2.msra.mxu0 0.0
    %837 = vmatprep.subr.mxu0 0.0
    %838 = vmatpush2.msra.mxu0 0.0
    %839 = vmatprep.subr.mxu0 0.0
    %840 = vmatpush2.msra.mxu0 0.0
    %841 = vmatprep.mubr.f32.mxu0 0.0
    %842 = vmatmul.mubr.f32.gmra.mxu0 %v775
    %v843 = vpop.f32.mrf.mxu0
    %v844 = vadd.f32 0.0, %v843
    %v845 = vpop.f32.mrf.mxu0
    %846 = vdwg.mxu0
    %v848 = vrot.slane %v844, 1
    %v849 = vrot.slane %v844, 2
    %v852 = vadd.f32 %v140, %v848
    %v853 = vadd.f32 %v145, %v849
    %v854 = vmax.f32 %v852, 0.0
    %v855 = vmax.f32 %v853, 0.0
    %vm856 = vcmask 261127
    %857 = vst.msk [vmem:[#allocation9] sm:$0x80] %vm856, %v854
    %858 = vst.msk [vmem:[#allocation9 + $0x8] sm:$0x80] %vm856, %v855
    %v861 = vrot.slane %v855, 7
    %864 = vst.msk [vmem:[#allocation2 - $0x7] sm:$0x80] %vm856, %v854
    %865 = vst.msk [vmem:[#allocation2 + $0x1] sm:$0x1] %vm235, %v861
    // Predicated region
    $region30: #{tpu_custom_call.1} parent=1 // pred_check
      _
    $region31: #{tpu_custom_call.1} parent=1 // pred_check_branch
      %867 = sbr.rel (0) target = $region33
    $region32: #{tpu_custom_call.1} parent=1 // pred_region
      %s869 = ssub.s32 256, 256
      %870 = vsyncadd [#allocation5], %s869
      %s871 = sshll.u32 [#allocation9], 4
      %s872 = int_to_ptr.vmem [resolvable:$true] %s871
      %877 = dma.vmem_to_hbm [thread:$0]  %s872, 256, %s3, [#allocation5], 128, 128, 8
    $region33: #{tpu_custom_call.1} parent=1 // pred_fallthru
      _
    // Predicated region
    $region34: #{tpu_custom_call.1} parent=1 // pred_check
      _
    $region35: #{tpu_custom_call.1} parent=1 // pred_check_branch
      %879 = sbr.rel (0) target = $region37
    $region36: #{tpu_custom_call.1} parent=1 // pred_region
      %880 = dma.done [#allocation5], 256
    $region37: #{tpu_custom_call.1} parent=1 // pred_fallthru
      _
    %881 = vsyncpa [#allocation4], 1
    %882 = vsyncpa [#allocation7], 1
    %883 = vsyncpa [#allocation5], 1

</llo_original>
